<compile_context>
chip_gen: v7x
topology: tpu7x:2x2x1
jax: 0.10.0
libtpu: 0.0.40
codegen_flags: <defaults>
</compile_context>

<pallas_src>
import jax
import jax.numpy as jnp
from jax.experimental import pallas as pl
from jax.experimental.pallas import tpu as pltpu


def _attention_pooling_kernel(w_ref, x_ref, o_ref):
    # w_ref: (1, D)       projection vector, lane-major
    # x_ref: (TB, T, D)   TB batch rows
    # o_ref: (TB, 1, D)   pooled outputs
    xf = x_ref[...].astype(jnp.float32)            # hoisted f32 cast, reused twice
    w = w_ref[...].astype(jnp.float32)             # (1, D)

    # attention scores: (TB, T)   (VPU multiply + lane reduce over D)
    scores = jnp.sum(xf * w[:, None, :], axis=-1)

    # numerically stable softmax over T, normalization deferred
    m = jnp.max(scores, axis=1, keepdims=True)     # (TB, 1)
    e = jnp.exp(scores - m)                        # (TB, T)
    denom = jnp.sum(e, axis=1, keepdims=True)      # (TB, 1)

    # unnormalized weighted sum through the MXU: (TB,1,T) @ (TB,T,D) -> (TB,1,D)
    acc = jnp.einsum(
        'bqt,btd->bqd', e[:, None, :], xf,
        preferred_element_type=jnp.float32)        # (TB, 1, D)

    # one scale per row at the end instead of T per-element divisions
    inv = pl.reciprocal(denom, approx=False)[:, :, None]   # (TB, 1, 1)
    o_ref[...] = (acc * inv).astype(o_ref.dtype)


def _largest_divisor_at_most(n, cap):
    cap = max(1, min(n, cap))
    for d in range(cap, 0, -1):
        if n % d == 0:
            return d
    return 1


def attention_pooling(x, w):
    """
    x: [B, T, D] float
    w: projection weight; accepts PyTorch layout (1, D), transposed (D, 1) or flat (D,).
    returns: [B, D]
    """
    B, T, D = x.shape
    w = w.reshape(1, D) if w.size == D else w
    assert w.shape == (1, D), f"weight must reshape to (1, {D}), got {w.shape}"

    # Rows per step: largest divisor of B such that the x block is <= ~2 MiB
    # (>= ~1 MiB saturates HBM per measured Pallas data) -- avoids ragged tail
    # blocks and stays well inside scoped VMEM even when double-buffered.
    bytes_per_row = T * D * x.dtype.itemsize
    target_block_bytes = 2 * 1024 * 1024
    tb = _largest_divisor_at_most(B, max(1, target_block_bytes // max(1, bytes_per_row)))
    grid = (B // tb,)

    cost = pl.CostEstimate(
        flops=4 * B * T * D,
        transcendentals=B * T,
        bytes_accessed=(B * T * D + B * D) * x.dtype.itemsize
                       + D * w.dtype.itemsize,
    )

    out3 = pl.pallas_call(
        _attention_pooling_kernel,
        out_shape=jax.ShapeDtypeStruct((B, 1, D), x.dtype),
        grid=grid,
        in_specs=[
            pl.BlockSpec((1, D), lambda b: (0, 0)),          # weight, resident
            pl.BlockSpec((tb, T, D), lambda b: (b, 0, 0)),   # TB batch rows
        ],
        out_specs=pl.BlockSpec((tb, 1, D), lambda b: (b, 0, 0)),
        compiler_params=pltpu.CompilerParams(
            dimension_semantics=("parallel",),
            vmem_limit_bytes=48 * 1024 * 1024,
        ),
        cost_estimate=cost,
    )(w, x)
    return out3.reshape(B, D)


def attention_pooling_ref(x, w):
    wf = w.reshape(-1).astype(jnp.float32)                        # (D,)
    scores = jnp.einsum('btd,d->bt', x.astype(jnp.float32), wf)[..., None]
    weights = jax.nn.softmax(scores, axis=1)
    return jnp.sum(weights * x.astype(jnp.float32), axis=1).astype(x.dtype)


if __name__ == "__main__":
    B, T, D = 2, 8, 32

    key = jax.random.PRNGKey(0)
    kx, kw = jax.random.split(key)

    x = jax.random.normal(kx, (B, T, D), dtype=jnp.float32)
    # nn.Linear(d_model, 1, bias=False).weight has shape (1, D) in PyTorch.
    bound = 1.0 / (D ** 0.5)
    w = jax.random.uniform(kw, (1, D), minval=-bound, maxval=bound,
                           dtype=jnp.float32)

    out = jax.block_until_ready(attention_pooling(x, w))
    ref = attention_pooling_ref(x, w)

    assert out.shape == (B, D)
    assert jnp.allclose(out, ref, atol=1e-5, rtol=1e-5), (out, ref)
    print("KERNEL_OK")
</pallas_src>

<mosaic_0001>
module attributes {stable_mosaic.version = 11 : i64} {
  func.func @_attention_pooling_kernel(%arg0: i32, %arg1: memref<1x32xf32, #tpu.memory_space<vmem>>, %arg2: memref<2x8x32xf32, #tpu.memory_space<vmem>>, %arg3: memref<2x1x32xf32, #tpu.memory_space<vmem>>) attributes {dimension_semantics = [#tpu.dimension_semantics<parallel>], iteration_bounds = array<i64: 1>, scalar_prefetch = 0 : i64, scratch_operands = 0 : i64, tpu.core_type = #tpu.core_type<tc>, window_params = [{pipeline_mode = #tpu.pipeline_mode<synchronous>, transform_indices = @transform_0, window_bounds = array<i64: 1, 32>}, {transform_indices = @transform_1, window_bounds = array<i64: 2, 8, 32>}, {transform_indices = @transform_2, window_bounds = array<i64: 2, 1, 32>}]} {
    %c0 = arith.constant 0 : index
    %c0_0 = arith.constant 0 : index
    %c0_1 = arith.constant 0 : index
    %0 = vector.load %arg2[%c0, %c0_0, %c0_1] : memref<2x8x32xf32, #tpu.memory_space<vmem>>, vector<2x8x32xf32>
    %c0_2 = arith.constant 0 : index
    %c0_3 = arith.constant 0 : index
    %1 = vector.load %arg1[%c0_2, %c0_3] : memref<1x32xf32, #tpu.memory_space<vmem>>, vector<1x32xf32>
    %2 = vector.shape_cast %1 : vector<1x32xf32> to vector<1x1x32xf32>
    %3 = vector.broadcast %2 : vector<1x1x32xf32> to vector<2x8x32xf32>
    %4 = arith.mulf %0, %3 : vector<2x8x32xf32>
    %cst = arith.constant dense<0.000000e+00> : vector<2x8xf32>
    %5 = vector.multi_reduction <add>, %4, %cst [2] : vector<2x8x32xf32> to vector<2x8xf32>
    %cst_4 = arith.constant dense<0xFF800000> : vector<2xf32>
    %6 = vector.multi_reduction <maximumf>, %5, %cst_4 [1] : vector<2x8xf32> to vector<2xf32>
    %7 = vector.shape_cast %6 : vector<2xf32> to vector<2x1xf32>
    %8 = vector.broadcast %7 : vector<2x1xf32> to vector<2x8xf32>
    %9 = arith.subf %5, %8 : vector<2x8xf32>
    %10 = math.exp %9 : vector<2x8xf32>
    %cst_5 = arith.constant dense<0.000000e+00> : vector<2xf32>
    %11 = vector.multi_reduction <add>, %10, %cst_5 [1] : vector<2x8xf32> to vector<2xf32>
    %12 = vector.shape_cast %11 : vector<2xf32> to vector<2x1xf32>
    %13 = vector.shape_cast %10 : vector<2x8xf32> to vector<2x1x8xf32>
    "tpu.trace_start"() <{level = 10 : i32, message = "bqt,btd->bqd"}> : () -> ()
    %cst_6 = arith.constant dense<0.000000e+00> : vector<2x1x32xf32>
    %14 = tpu.matmul %13, %0, %cst_6 {dimension_numbers = #tpu.dot_dimension_numbers<[2], [1], [1], [2], [0, 0, 0, 1, 1, 2], [0], [0]>} : vector<2x1x8xf32>, vector<2x8x32xf32>, vector<2x1x32xf32> -> vector<2x1x32xf32>
    "tpu.trace_stop"() : () -> ()
    %15 = tpu.reciprocal %12 : vector<2x1xf32> -> vector<2x1xf32>
    %16 = vector.shape_cast %15 : vector<2x1xf32> to vector<2x1x1xf32>
    %17 = vector.broadcast %16 : vector<2x1x1xf32> to vector<2x1x32xf32>
    %18 = arith.mulf %14, %17 : vector<2x1x32xf32>
    %c0_7 = arith.constant 0 : index
    %c0_8 = arith.constant 0 : index
    %c0_9 = arith.constant 0 : index
    %19 = vector.load %arg3[%c0_7, %c0_8, %c0_9] : memref<2x1x32xf32, #tpu.memory_space<vmem>>, vector<2x1x32xf32>
    tpu.vector_store %arg3[%c0_7, %c0_8, %c0_9], %18 {strides = array<i32>} : memref<2x1x32xf32, #tpu.memory_space<vmem>>, vector<2x1x32xf32>,
    return
  }
  func.func @transform_0(%arg0: i32) -> (i32, i32) {
    %c0_i32 = arith.constant 0 : i32
    %c0_i32_0 = arith.constant 0 : i32
    %c0_i32_1 = arith.constant 0 : i32
    return %c0_i32, %c0_i32_0 : i32, i32
  }
  func.func @transform_1(%arg0: i32) -> (i32, i32, i32) {
    %c0_i32 = arith.constant 0 : i32
    %c0_i32_0 = arith.constant 0 : i32
    %c0_i32_1 = arith.constant 0 : i32
    return %arg0, %c0_i32, %c0_i32_0 : i32, i32, i32
  }
  func.func @transform_2(%arg0: i32) -> (i32, i32, i32) {
    %c0_i32 = arith.constant 0 : i32
    %c0_i32_0 = arith.constant 0 : i32
    %c0_i32_1 = arith.constant 0 : i32
    return %arg0, %c0_i32, %c0_i32_0 : i32, i32, i32
  }
}

</mosaic_0001>

<llo_original>
// kernel: tpu_custom_call.1
$region0: #{tpu_custom_call.1}
  #allocation0 [shape = 'u32[]', space=smem, size = 0x4, offset = 0x4, fixed_abs, tag = 'smem constant byte address 0x4 - core index']
  #allocation1 [shape = 'u32[144,128]{1,0:T(1,128)}', space=vmem, size = 0x12000, scoped, tag = 'internal scratch']
  %s0 = inlined_call_operand.hbm [shape: f32[1,32], index: 0, kind: input, shape index: {}]
  %s1 = inlined_call_operand.hbm [shape: f32[2,8,32], index: 1, kind: input, shape index: {}]
  %s2 = inlined_call_operand.hbm [shape: f32[2,1,32], index: 2, kind: output, shape index: {}]
  %s3 = sld [smem:[#allocation0]]
  $region26: #{tpu_custom_call.1} parent=0
    _
  %s5 = ssub.s32 1, %s3
  %s6 = scalar_select 0, %s5, %s3
  $region1: #{tpu_custom_call.1} parent=0
    #allocation2 [shape = 'u8[512]{0}', space=vmem, size = 0x400, scoped, tag = 'input window, operand 0, single buffered']
    #allocation3 [shape = 's32[1]{0}', space=sflag, size = 0x4, scoped, tag = 'scoped memory for tpu_custom_call.1']
    #allocation4 [shape = 's32[1]{0}', space=sflag, size = 0x4, scoped, tag = 'scoped memory for tpu_custom_call.1']
    #allocation5 [shape = 'u8[8192]{0}', space=vmem, size = 0x2000, scoped, tag = 'input window, operand 1, single buffered']
    #allocation6 [shape = 's32[1]{0}', space=sflag, size = 0x4, scoped, tag = 'scoped memory for tpu_custom_call.1']
    #allocation7 [shape = 'u8[1024]{0}', space=vmem, size = 0x400, scoped, tag = 'output window, operand 0, single buffered']
    %7 = vsyncpa [#allocation3], 0
    %8 = vsyncpa [#allocation6], 0
    %9 = vsyncpa [#allocation4], 0
    // Predicated region
    $region2: #{tpu_custom_call.1} parent=1 // pred_check
      _
    $region3: #{tpu_custom_call.1} parent=1 // pred_check_branch
      %11 = sbr.rel (0) target = $region5
    $region4: #{tpu_custom_call.1} parent=1 // pred_region
      %s13 = ssub.s32 16, 16
      %14 = vsyncadd [#allocation3], %s13
      %s16 = sshll.u32 [#allocation2], 4
      %s17 = int_to_ptr.vmem [resolvable:$true] %s16
      %19 = dma.hbm_to_vmem [thread:$0]  %s0, 16, %s17, [#allocation3]
    $region5: #{tpu_custom_call.1} parent=1 // pred_fallthru
      _
    // Predicated region
    $region6: #{tpu_custom_call.1} parent=1 // pred_check
      _
    $region7: #{tpu_custom_call.1} parent=1 // pred_check_branch
      %21 = sbr.rel (0) target = $region9
    $region8: #{tpu_custom_call.1} parent=1 // pred_region
      %s23 = ssub.s32 256, 256
      %24 = vsyncadd [#allocation6], %s23
      %s25 = sshll.u32 [#allocation5], 4
      %s26 = int_to_ptr.vmem [resolvable:$true] %s25
      %31 = dma.hbm_to_vmem [thread:$0]  %s1, 256, %s26, [#allocation6], 128, 128, 8
    $region9: #{tpu_custom_call.1} parent=1 // pred_fallthru
      _
    // Predicated region
    $region10: #{tpu_custom_call.1} parent=1 // pred_check
      _
    $region11: #{tpu_custom_call.1} parent=1 // pred_check_branch
      %33 = sbr.rel (0) target = $region13
    $region12: #{tpu_custom_call.1} parent=1 // pred_region
      %34 = dma.done [#allocation3], 16
    $region13: #{tpu_custom_call.1} parent=1 // pred_fallthru
      _
    // Predicated region
    $region14: #{tpu_custom_call.1} parent=1 // pred_check
      _
    $region15: #{tpu_custom_call.1} parent=1 // pred_check_branch
      %36 = sbr.rel (0) target = $region17
    $region16: #{tpu_custom_call.1} parent=1 // pred_region
      %37 = dma.done [#allocation6], 256
    $region17: #{tpu_custom_call.1} parent=1 // pred_fallthru
      _
    %v38 = vld [vmem:[#allocation5] sm:$0xff]
    %v39 = vld [vmem:[#allocation5 + $0x8] sm:$0xff]
    %v40 = vld [vmem:[#allocation2] sm:$0x1]
    %v42 = vlaneseq
    %v43 = vshrl.u32 %v42, 7
    %v44 = vsub.s32 0, %v43
    %v45 = vrot.slane %v40, %v44
    %v47 = vmul.f32 %v38, %v45
    %v48 = vmul.f32 %v39, %v45
    %vm49 = vcmask 261120
    %v50 = vsel %vm49, %v47, 0.0
    %51 = vadd.xlane.f32.xlu0 %v50
    %v52 = vpop.xlane.xlu0 %51
    %v53 = vsel %vm49, %v48, 0.0
    %54 = vadd.xlane.f32.xlu0 %v53
    %v55 = vpop.xlane.xlu0 %54
    %v58 = vlaneseq
    %v59 = vand.u32 %v58, 127
    %v60 = vlaneseq
    %v61 = vshrl.u32 %v60, 7
    %v62 = vsub.s32 %v59, %v61
    %v63 = vrot.slane %v52, %v62
    %v64 = vlaneseq
    %v65 = vshrl.u32 %v64, 7
    %v66 = vsub.s32 %v59, %v65
    %v67 = vrot.slane %v55, %v66
    %vm68 = vcmask 1041409
    %v69 = vsel %vm68, %v67, %v63
    %vm71 = vcmask 58368
    %v72 = vsel %vm71, %v69, -inf
    %73 = vmax.xlane.f32.xlu0 %v72
    %v74 = vpop.xlane.xlu0 %73
    %v76 = vlaneseq
    %v77 = vshrl.u32 %v76, 7
    %v78 = vsub.s32 0, %v77
    %v79 = vrot.slane %v74, %v78
    %v80 = vlaneseq
    %v81 = vshrl.u32 %v80, 7
    %v82 = vsub.s32 1, %v81
    %v83 = vrot.slane %v74, %v82
    %v86 = vsub.f32 %v52, %v79
    %v87 = vsub.f32 %v55, %v83
    %v88 = vmul.f32 %v86, 1.442695
    %v89 = vpow.pop %v88
    %v90 = vmul.f32 %v87, 1.442695
    %v91 = vpow.pop %v90
    %94 = vset.pattern.permute.xlu0 0
    %95 = vperm.xlu0 %94, %v89
    %v96 = vpop.permute.xlu0 %95
    %97 = vset.pattern.permute.xlu0 0
    %98 = vperm.xlu0 %97, %v91
    %v99 = vpop.permute.xlu0 %98
    %v100 = vlaneseq
    %v101 = vshrl.u32 %v100, 7
    %v102 = vsub.s32 %v59, %v101
    %v103 = vrot.slane %v96, %v102
    %v104 = vlaneseq
    %v105 = vshrl.u32 %v104, 7
    %v106 = vsub.s32 %v59, %v105
    %v107 = vrot.slane %v99, %v106
    %v108 = vsel %vm68, %v107, %v103
    %v110 = vsel %vm71, %v108, 0.0
    %111 = vadd.xlane.f32.xlu0 %v110
    %v112 = vpop.xlane.xlu0 %111
    %vm113 = vcmask 64512
    %v114 = vsel %vm113, %v103, 0
    %116 = vmatprep.subr.mxu0 0.0
    %117 = vmatpush1.msra.mxu0 %v38
    %118 = vmatprep.subr.mxu0 0.0
    %119 = vmatpush1.msra.mxu0 0.0
    %120 = vmatprep.subr.mxu0 0.0
    %121 = vmatpush1.msra.mxu0 0.0
    %122 = vmatprep.subr.mxu0 0.0
    %123 = vmatpush1.msra.mxu0 0.0
    %124 = vmatprep.subr.mxu0 0.0
    %125 = vmatpush1.msra.mxu0 0.0
    %126 = vmatprep.subr.mxu0 0.0
    %127 = vmatpush1.msra.mxu0 0.0
    %128 = vmatprep.subr.mxu0 0.0
    %129 = vmatpush1.msra.mxu0 0.0
    %130 = vmatprep.subr.mxu0 0.0
    %131 = vmatpush1.msra.mxu0 0.0
    %132 = vmatprep.subr.mxu0 0.0
    %133 = vmatpush1.msra.mxu0 0.0
    %134 = vmatprep.subr.mxu0 0.0
    %135 = vmatpush1.msra.mxu0 0.0
    %136 = vmatprep.subr.mxu0 0.0
    %137 = vmatpush1.msra.mxu0 0.0
    %138 = vmatprep.subr.mxu0 0.0
    %139 = vmatpush1.msra.mxu0 0.0
    %140 = vmatprep.subr.mxu0 0.0
    %141 = vmatpush1.msra.mxu0 0.0
    %142 = vmatprep.subr.mxu0 0.0
    %143 = vmatpush1.msra.mxu0 0.0
    %144 = vmatprep.subr.mxu0 0.0
    %145 = vmatpush1.msra.mxu0 0.0
    %146 = vmatprep.subr.mxu0 0.0
    %147 = vmatpush1.msra.mxu0 0.0
    %148 = vmatprep.subr.mxu0 0.0
    %149 = vmatpush1.msra.mxu0 0.0
    %150 = vmatprep.subr.mxu0 0.0
    %151 = vmatpush1.msra.mxu0 0.0
    %152 = vmatprep.subr.mxu0 0.0
    %153 = vmatpush1.msra.mxu0 0.0
    %154 = vmatprep.subr.mxu0 0.0
    %155 = vmatpush1.msra.mxu0 0.0
    %156 = vmatprep.subr.mxu0 0.0
    %157 = vmatpush1.msra.mxu0 0.0
    %158 = vmatprep.subr.mxu0 0.0
    %159 = vmatpush1.msra.mxu0 0.0
    %160 = vmatprep.subr.mxu0 0.0
    %161 = vmatpush1.msra.mxu0 0.0
    %162 = vmatprep.subr.mxu0 0.0
    %163 = vmatpush1.msra.mxu0 0.0
    %164 = vmatprep.subr.mxu0 0.0
    %165 = vmatpush1.msra.mxu0 0.0
    %166 = vmatprep.subr.mxu0 0.0
    %167 = vmatpush1.msra.mxu0 0.0
    %168 = vmatprep.subr.mxu0 0.0
    %169 = vmatpush1.msra.mxu0 0.0
    %170 = vmatprep.subr.mxu0 0.0
    %171 = vmatpush1.msra.mxu0 0.0
    %172 = vmatprep.subr.mxu0 0.0
    %173 = vmatpush1.msra.mxu0 0.0
    %174 = vmatprep.subr.mxu0 0.0
    %175 = vmatpush1.msra.mxu0 0.0
    %176 = vmatprep.subr.mxu0 0.0
    %177 = vmatpush1.msra.mxu0 0.0
    %178 = vmatprep.subr.mxu0 0.0
    %179 = vmatpush1.msra.mxu0 0.0
    %180 = vmatprep.mubr.f32.mxu0 0.0
    %181 = vmatmul.mubr.f32.gmra.mrb[0].mxu0 %v114
    %v182 = vpop.f32.mrb[0].mxu0
    %v183 = vadd.f32 0.0, %v182
    %v184 = vpop.f32.mrb[0].mxu0
    %185 = vdwg.mxu0
    %v186 = vsel %vm113, %v107, 0
    %188 = vmatprep.subr.mxu0 0.0
    %189 = vmatpush1.msra.mxu0 %v39
    %190 = vmatprep.subr.mxu0 0.0
    %191 = vmatpush1.msra.mxu0 0.0
    %192 = vmatprep.subr.mxu0 0.0
    %193 = vmatpush1.msra.mxu0 0.0
    %194 = vmatprep.subr.mxu0 0.0
    %195 = vmatpush1.msra.mxu0 0.0
    %196 = vmatprep.subr.mxu0 0.0
    %197 = vmatpush1.msra.mxu0 0.0
    %198 = vmatprep.subr.mxu0 0.0
    %199 = vmatpush1.msra.mxu0 0.0
    %200 = vmatprep.subr.mxu0 0.0
    %201 = vmatpush1.msra.mxu0 0.0
    %202 = vmatprep.subr.mxu0 0.0
    %203 = vmatpush1.msra.mxu0 0.0
    %204 = vmatprep.subr.mxu0 0.0
    %205 = vmatpush1.msra.mxu0 0.0
    %206 = vmatprep.subr.mxu0 0.0
    %207 = vmatpush1.msra.mxu0 0.0
    %208 = vmatprep.subr.mxu0 0.0
    %209 = vmatpush1.msra.mxu0 0.0
    %210 = vmatprep.subr.mxu0 0.0
    %211 = vmatpush1.msra.mxu0 0.0
    %212 = vmatprep.subr.mxu0 0.0
    %213 = vmatpush1.msra.mxu0 0.0
    %214 = vmatprep.subr.mxu0 0.0
    %215 = vmatpush1.msra.mxu0 0.0
    %216 = vmatprep.subr.mxu0 0.0
    %217 = vmatpush1.msra.mxu0 0.0
    %218 = vmatprep.subr.mxu0 0.0
    %219 = vmatpush1.msra.mxu0 0.0
    %220 = vmatprep.subr.mxu0 0.0
    %221 = vmatpush1.msra.mxu0 0.0
    %222 = vmatprep.subr.mxu0 0.0
    %223 = vmatpush1.msra.mxu0 0.0
    %224 = vmatprep.subr.mxu0 0.0
    %225 = vmatpush1.msra.mxu0 0.0
    %226 = vmatprep.subr.mxu0 0.0
    %227 = vmatpush1.msra.mxu0 0.0
    %228 = vmatprep.subr.mxu0 0.0
    %229 = vmatpush1.msra.mxu0 0.0
    %230 = vmatprep.subr.mxu0 0.0
    %231 = vmatpush1.msra.mxu0 0.0
    %232 = vmatprep.subr.mxu0 0.0
    %233 = vmatpush1.msra.mxu0 0.0
    %234 = vmatprep.subr.mxu0 0.0
    %235 = vmatpush1.msra.mxu0 0.0
    %236 = vmatprep.subr.mxu0 0.0
    %237 = vmatpush1.msra.mxu0 0.0
    %238 = vmatprep.subr.mxu0 0.0
    %239 = vmatpush1.msra.mxu0 0.0
    %240 = vmatprep.subr.mxu0 0.0
    %241 = vmatpush1.msra.mxu0 0.0
    %242 = vmatprep.subr.mxu0 0.0
    %243 = vmatpush1.msra.mxu0 0.0
    %244 = vmatprep.subr.mxu0 0.0
    %245 = vmatpush1.msra.mxu0 0.0
    %246 = vmatprep.subr.mxu0 0.0
    %247 = vmatpush1.msra.mxu0 0.0
    %248 = vmatprep.subr.mxu0 0.0
    %249 = vmatpush1.msra.mxu0 0.0
    %250 = vmatprep.subr.mxu0 0.0
    %251 = vmatpush1.msra.mxu0 0.0
    %252 = vmatprep.mubr.f32.mxu0 0.0
    %253 = vmatmul.mubr.f32.gmra.mrb[0].mxu0 %v186
    %v254 = vpop.f32.mrb[0].mxu0
    %v255 = vadd.f32 0.0, %v254
    %v256 = vpop.f32.mrb[0].mxu0
    %257 = vdwg.mxu0
    %v258 = vrcp.pop %v112
    %v260 = vlaneseq
    %v261 = vshrl.u32 %v260, 7
    %v262 = vsub.s32 0, %v261
    %v263 = vrot.slane %v258, %v262
    %v264 = vlaneseq
    %v265 = vshrl.u32 %v264, 7
    %v266 = vsub.s32 1, %v265
    %v267 = vrot.slane %v258, %v266
    %v270 = vmul.f32 %v183, %v263
    %v271 = vmul.f32 %v255, %v267
    %vm272 = vcmask 253952
    %273 = vst.msk [vmem:[#allocation7] sm:$0x1] %vm272, %v270
    %274 = vst.msk [vmem:[#allocation7 + $0x1] sm:$0x1] %vm272, %v271
    // Predicated region
    $region18: #{tpu_custom_call.1} parent=1 // pred_check
      _
    $region19: #{tpu_custom_call.1} parent=1 // pred_check_branch
      %276 = sbr.rel (0) target = $region21
    $region20: #{tpu_custom_call.1} parent=1 // pred_region
      %s278 = ssub.s32 32, 32
      %279 = vsyncadd [#allocation4], %s278
      %s280 = sshll.u32 [#allocation7], 4
      %s281 = int_to_ptr.vmem [resolvable:$true] %s280
      %286 = dma.vmem_to_hbm [thread:$0]  %s281, 32, %s2, [#allocation4], 16, 16, 1
    $region21: #{tpu_custom_call.1} parent=1 // pred_fallthru
      _
    // Predicated region
    $region22: #{tpu_custom_call.1} parent=1 // pred_check
      _
    $region23: #{tpu_custom_call.1} parent=1 // pred_check_branch
      %288 = sbr.rel (0) target = $region25
    $region24: #{tpu_custom_call.1} parent=1 // pred_region
      %289 = dma.done [#allocation4], 32
    $region25: #{tpu_custom_call.1} parent=1 // pred_fallthru
      _
    %290 = vsyncpa [#allocation3], 1
    %291 = vsyncpa [#allocation6], 1
    %292 = vsyncpa [#allocation4], 1

</llo_original>
